<compile_context>
chip_gen: v5e
topology: v5e:2x2
jax: 0.10.0
libtpu: 0.0.40
codegen_flags: <defaults>
</compile_context>

<pallas_src>
import functools

import jax
import jax.numpy as jnp
from jax.experimental import pallas as pl
from jax.experimental.pallas import tpu as pltpu

LN_EPS = 1e-5                      # nn.LayerNorm default
VMEM_BUDGET = 48 * 1024 * 1024     # safe on v7x (64 MiB phys) and v5e/v6e


def _round_up(x, m):
    return (x + m - 1) // m * m


def _cdiv(a, b):
    return (a + b - 1) // b


def _layernorm_f32(xf, gamma_f32, beta_f32, d_true):
    """One-pass LayerNorm stats over the TRUE dim (padded cols are zero)."""
    inv_d = jnp.float32(1.0 / d_true)
    s1 = jnp.sum(xf, axis=-1, keepdims=True)
    s2 = jnp.sum(xf * xf, axis=-1, keepdims=True)
    mean = s1 * inv_d
    var = jnp.maximum(s2 * inv_d - mean * mean, 0.0)
    inv = jax.lax.rsqrt(var + LN_EPS)
    # padded cols: x = 0, gamma = 0, beta = 0  ->  normed col is exactly 0
    return (xf - mean) * inv * gamma_f32 + beta_f32


def _prenorm_full_kernel(d_true, x_ref, gamma_ref, beta_ref, w_ref, b_ref, o_ref):
    # x_ref: (tm, Dp); w_ref: (Dp, Dp) in (in, out) layout, fully VMEM-resident
    xf = x_ref[...].astype(jnp.float32)
    normed = _layernorm_f32(xf, gamma_ref[...], beta_ref[...], d_true)
    normed = normed.astype(x_ref.dtype)            # bf16 MXU fast path when bf16
    y = jnp.dot(normed, w_ref[...], preferred_element_type=jnp.float32)
    o_ref[...] = (y + b_ref[...]).astype(o_ref.dtype)


def _prenorm_tiled_kernel(d_true, x_ref, gamma_ref, beta_ref, w_ref, b_ref,
                          o_ref, normed_ref):
    # Fallback for very large Dp: weight is N-tiled; LayerNorm computed once
    # per row tile (j == 0) and cached in VMEM scratch for the other j slabs.
    @pl.when(pl.program_id(1) == 0)
    def _():
        xf = x_ref[...].astype(jnp.float32)
        normed = _layernorm_f32(xf, gamma_ref[...], beta_ref[...], d_true)
        normed_ref[...] = normed.astype(normed_ref.dtype)

    y = jnp.dot(normed_ref[...], w_ref[...], preferred_element_type=jnp.float32)
    o_ref[...] = (y + b_ref[...]).astype(o_ref.dtype)


def _vmem_full_bytes(tm, dp, itemsize):
    return (2 * tm * dp * itemsize          # x blocks (double-buffered)
            + 2 * dp * dp * itemsize        # resident weight (conservative 2x)
            + 2 * tm * dp * itemsize        # output blocks
            + 4 * tm * dp * 4               # f32 LN temporaries + matmul acc
            + 8 * dp * 4)                   # gamma / beta / bias


def _vmem_tiled_bytes(tm, dp, tn, itemsize):
    return (2 * tm * dp * itemsize          # x blocks
            + 2 * dp * tn * itemsize        # weight slabs
            + 2 * tm * tn * itemsize        # output blocks
            + tm * dp * itemsize            # `normed` scratch
            + 3 * tm * dp * 4 + tm * tn * 4 # f32 temporaries
            + 8 * dp * 4)


@functools.partial(jax.jit, static_argnames=("tm",))
def prenorm_linear(x, gamma, beta, w, b, *, tm=512):
    """PreNorm(dim, Linear(dim, dim)) forward.

    x:     (B, S, D)
    gamma: (D,)  beta: (D,)            LayerNorm params
    w:     (D, D) [out, in]  b: (D,)   Linear params (PyTorch convention)
    """
    B, S, D = x.shape
    rows = B * S
    itemsize = jnp.dtype(x.dtype).itemsize
    Dp = _round_up(D, 128)                         # lane-dense last dim

    # --- row tile -------------------------------------------------------
    tm_eff = rows if rows <= tm else tm
    if rows > 256 and _cdiv(rows, tm_eff) < 2:     # keep both v7x TCs busy
        tm_eff = _round_up(_cdiv(rows, 2), 8)

    # --- keep the whole weight resident whenever it fits the budget ------
    full = _vmem_full_bytes(tm_eff, Dp, itemsize) <= VMEM_BUDGET
    while not full and tm_eff > 64:
        tm_eff = max(64, _round_up(tm_eff // 2, 8))
        full = _vmem_full_bytes(tm_eff, Dp, itemsize) <= VMEM_BUDGET

    if full:
        tn_eff = Dp
        vmem_needed = _vmem_full_bytes(tm_eff, Dp, itemsize)
    else:
        tn_eff = 128
        for cand in range(Dp, 0, -128):
            if Dp % cand == 0 and _vmem_tiled_bytes(tm_eff, Dp, cand,
                                                    itemsize) <= VMEM_BUDGET:
                tn_eff = cand
                break
        vmem_needed = _vmem_tiled_bytes(tm_eff, Dp, tn_eff, itemsize)

    n_row_tiles = _cdiv(rows, tm_eff)

    # --- stage operands (one-time XLA ops, fully amortized) --------------
    x2 = x.reshape(rows, D)
    if Dp != D:
        x2 = jnp.pad(x2, ((0, 0), (0, Dp - D)))    # feature-dim padding only
    gamma2 = jnp.pad(gamma.astype(jnp.float32), (0, Dp - D)).reshape(1, Dp)
    beta2 = jnp.pad(beta.astype(jnp.float32), (0, Dp - D)).reshape(1, Dp)
    # (out, in) -> (in, out) once + cast to x dtype (bf16 weight staging)
    w2 = jnp.pad(w.T.astype(x.dtype), ((0, Dp - D), (0, Dp - D)))
    b2 = jnp.pad(b.astype(jnp.float32), (0, Dp - D)).reshape(1, Dp)

    vmem_limit = int(min(VMEM_BUDGET,
                         max(32 * 1024 * 1024,
                             vmem_needed + 8 * 1024 * 1024)))
    cost = pl.CostEstimate(
        flops=2 * rows * Dp * Dp,
        transcendentals=rows,
        bytes_accessed=2 * rows * Dp * itemsize
        + (1 if full else n_row_tiles) * Dp * Dp * itemsize
        + 3 * Dp * 4)

    if full:
        out = pl.pallas_call(
            functools.partial(_prenorm_full_kernel, D),
            out_shape=jax.ShapeDtypeStruct((rows, Dp), x.dtype),
            grid_spec=pltpu.PrefetchScalarGridSpec(
                num_scalar_prefetch=0,
                grid=(n_row_tiles,),
                in_specs=[
                    pl.BlockSpec((tm_eff, Dp), lambda i: (i, 0)),   # x rows
                    pl.BlockSpec((1, Dp), lambda i: (0, 0)),        # gamma
                    pl.BlockSpec((1, Dp), lambda i: (0, 0)),        # beta
                    pl.BlockSpec((Dp, Dp), lambda i: (0, 0)),       # resident W
                    pl.BlockSpec((1, Dp), lambda i: (0, 0)),        # bias
                ],
                out_specs=pl.BlockSpec((tm_eff, Dp), lambda i: (i, 0)),
            ),
            compiler_params=pltpu.CompilerParams(
                dimension_semantics=("parallel",),
                vmem_limit_bytes=vmem_limit,
            ),
            cost_estimate=cost,
        )(x2, gamma2, beta2, w2, b2)
    else:
        out = pl.pallas_call(
            functools.partial(_prenorm_tiled_kernel, D),
            out_shape=jax.ShapeDtypeStruct((rows, Dp), x.dtype),
            grid_spec=pltpu.PrefetchScalarGridSpec(
                num_scalar_prefetch=0,
                grid=(n_row_tiles, Dp // tn_eff),
                in_specs=[
                    pl.BlockSpec((tm_eff, Dp), lambda i, j: (i, 0)),    # x rows
                    pl.BlockSpec((1, Dp), lambda i, j: (0, 0)),         # gamma
                    pl.BlockSpec((1, Dp), lambda i, j: (0, 0)),         # beta
                    pl.BlockSpec((Dp, tn_eff), lambda i, j: (0, j)),    # W slab
                    pl.BlockSpec((1, tn_eff), lambda i, j: (0, j)),     # bias
                ],
                out_specs=pl.BlockSpec((tm_eff, tn_eff), lambda i, j: (i, j)),
                scratch_shapes=[pltpu.VMEM((tm_eff, Dp), x.dtype)],
            ),
            compiler_params=pltpu.CompilerParams(
                dimension_semantics=("parallel", "arbitrary"),
                vmem_limit_bytes=vmem_limit,
            ),
            cost_estimate=cost,
        )(x2, gamma2, beta2, w2, b2)

    if Dp != D:
        out = out[:, :D]
    return out.reshape(B, S, D)


def _reference(x, gamma, beta, w, b):
    mean = jnp.mean(x, axis=-1, keepdims=True)
    var = jnp.mean((x - mean) ** 2, axis=-1, keepdims=True)
    normed = (x - mean) / jnp.sqrt(var + LN_EPS) * gamma + beta
    return jnp.einsum("bsd,od->bso", normed, w) + b


if __name__ == "__main__":
    key = jax.random.PRNGKey(0)
    B, S, D = 2, 8, 32  # batch=2, seq=8, hidden dim=32

    k1, k2, k3 = jax.random.split(key, 3)
    x = jax.random.normal(k1, (B, S, D), dtype=jnp.float32)

    # Deterministic parameter init (synthetic; not loaded from a checkpoint).
    gamma = jnp.ones((D,), dtype=jnp.float32)                    # LN weight init
    beta = jnp.zeros((D,), dtype=jnp.float32)                    # LN bias init
    w = jax.random.normal(k2, (D, D), dtype=jnp.float32) * 0.02  # Linear weight (out, in)
    b = jax.random.normal(k3, (D,), dtype=jnp.float32) * 0.02    # Linear bias

    out = prenorm_linear(x, gamma, beta, w, b)
    out = jax.block_until_ready(out)

    ref = _reference(x, gamma, beta, w, b)
    assert out.shape == (B, S, D)
    assert jnp.allclose(out, ref, atol=1e-4, rtol=1e-4), "mismatch vs reference"

    print("KERNEL_OK")
</pallas_src>

<mosaic_0001>
module attributes {stable_mosaic.version = 11 : i64} {
  func.func @_prenorm_full_kernel(%arg0: i32, %arg1: memref<16x128xf32, #tpu.memory_space<vmem>>, %arg2: memref<1x128xf32, #tpu.memory_space<vmem>>, %arg3: memref<1x128xf32, #tpu.memory_space<vmem>>, %arg4: memref<128x128xf32, #tpu.memory_space<vmem>>, %arg5: memref<1x128xf32, #tpu.memory_space<vmem>>, %arg6: memref<16x128xf32, #tpu.memory_space<vmem>>) attributes {dimension_semantics = [#tpu.dimension_semantics<parallel>], iteration_bounds = array<i64: 1>, scalar_prefetch = 0 : i64, scratch_operands = 0 : i64, tpu.core_type = #tpu.core_type<tc>, window_params = [{transform_indices = @transform_0, window_bounds = array<i64: 16, 128>}, {pipeline_mode = #tpu.pipeline_mode<synchronous>, transform_indices = @transform_1, window_bounds = array<i64: 1, 128>}, {pipeline_mode = #tpu.pipeline_mode<synchronous>, transform_indices = @transform_2, window_bounds = array<i64: 1, 128>}, {pipeline_mode = #tpu.pipeline_mode<synchronous>, transform_indices = @transform_3, window_bounds = array<i64: 128, 128>}, {pipeline_mode = #tpu.pipeline_mode<synchronous>, transform_indices = @transform_4, window_bounds = array<i64: 1, 128>}, {transform_indices = @transform_5, window_bounds = array<i64: 16, 128>}]} {
    %c0 = arith.constant 0 : index
    %c0_0 = arith.constant 0 : index
    %0 = vector.load %arg1[%c0, %c0_0] : memref<16x128xf32, #tpu.memory_space<vmem>>, vector<16x128xf32>
    %c0_1 = arith.constant 0 : index
    %c0_2 = arith.constant 0 : index
    %1 = vector.load %arg2[%c0_1, %c0_2] : memref<1x128xf32, #tpu.memory_space<vmem>>, vector<1x128xf32>
    %c0_3 = arith.constant 0 : index
    %c0_4 = arith.constant 0 : index
    %2 = vector.load %arg3[%c0_3, %c0_4] : memref<1x128xf32, #tpu.memory_space<vmem>>, vector<1x128xf32>
    %cst = arith.constant dense<0.000000e+00> : vector<16xf32>
    %3 = vector.multi_reduction <add>, %0, %cst [1] : vector<16x128xf32> to vector<16xf32>
    %4 = vector.shape_cast %3 : vector<16xf32> to vector<16x1xf32>
    %5 = arith.mulf %0, %0 : vector<16x128xf32>
    %cst_5 = arith.constant dense<0.000000e+00> : vector<16xf32>
    %6 = vector.multi_reduction <add>, %5, %cst_5 [1] : vector<16x128xf32> to vector<16xf32>
    %7 = vector.shape_cast %6 : vector<16xf32> to vector<16x1xf32>
    %cst_6 = arith.constant 3.125000e-02 : f32
    %8 = vector.broadcast %cst_6 : f32 to vector<16x1xf32>
    %9 = arith.mulf %4, %8 : vector<16x1xf32>
    %cst_7 = arith.constant 3.125000e-02 : f32
    %10 = vector.broadcast %cst_7 : f32 to vector<16x1xf32>
    %11 = arith.mulf %7, %10 : vector<16x1xf32>
    %12 = arith.mulf %9, %9 : vector<16x1xf32>
    %13 = arith.subf %11, %12 : vector<16x1xf32>
    %cst_8 = arith.constant 0.000000e+00 : f32
    %14 = vector.broadcast %cst_8 : f32 to vector<16x1xf32>
    %15 = arith.maximumf %13, %14 : vector<16x1xf32>
    %cst_9 = arith.constant 9.99999974E-6 : f32
    %16 = vector.broadcast %cst_9 : f32 to vector<16x1xf32>
    %17 = arith.addf %15, %16 : vector<16x1xf32>
    %18 = math.rsqrt %17 : vector<16x1xf32>
    %19 = vector.broadcast %9 : vector<16x1xf32> to vector<16x128xf32>
    %20 = arith.subf %0, %19 : vector<16x128xf32>
    %21 = vector.broadcast %18 : vector<16x1xf32> to vector<16x128xf32>
    %22 = arith.mulf %20, %21 : vector<16x128xf32>
    %23 = vector.broadcast %1 : vector<1x128xf32> to vector<16x128xf32>
    %24 = arith.mulf %22, %23 : vector<16x128xf32>
    %25 = vector.broadcast %2 : vector<1x128xf32> to vector<16x128xf32>
    %26 = arith.addf %24, %25 : vector<16x128xf32>
    %c0_10 = arith.constant 0 : index
    %c0_11 = arith.constant 0 : index
    %27 = vector.load %arg4[%c0_10, %c0_11] : memref<128x128xf32, #tpu.memory_space<vmem>>, vector<128x128xf32>
    %cst_12 = arith.constant dense<0.000000e+00> : vector<16x128xf32>
    %28 = tpu.matmul %26, %27, %cst_12 {dimension_numbers = #tpu.dot_dimension_numbers<[1], [0], [0], [1], [0, 0, 1, 1], [], []>} : vector<16x128xf32>, vector<128x128xf32>, vector<16x128xf32> -> vector<16x128xf32>
    %c0_13 = arith.constant 0 : index
    %c0_14 = arith.constant 0 : index
    %29 = vector.load %arg5[%c0_13, %c0_14] : memref<1x128xf32, #tpu.memory_space<vmem>>, vector<1x128xf32>
    %30 = vector.broadcast %29 : vector<1x128xf32> to vector<16x128xf32>
    %31 = arith.addf %28, %30 : vector<16x128xf32>
    %c0_15 = arith.constant 0 : index
    %c0_16 = arith.constant 0 : index
    %32 = vector.load %arg6[%c0_15, %c0_16] : memref<16x128xf32, #tpu.memory_space<vmem>>, vector<16x128xf32>
    tpu.vector_store %arg6[%c0_15, %c0_16], %31 {strides = array<i32>} : memref<16x128xf32, #tpu.memory_space<vmem>>, vector<16x128xf32>,
    return
  }
  func.func @transform_0(%arg0: i32) -> (i32, i32) {
    %c0_i32 = arith.constant 0 : i32
    %c0_i32_0 = arith.constant 0 : i32
    return %arg0, %c0_i32 : i32, i32
  }
  func.func @transform_1(%arg0: i32) -> (i32, i32) {
    %c0_i32 = arith.constant 0 : i32
    %c0_i32_0 = arith.constant 0 : i32
    %c0_i32_1 = arith.constant 0 : i32
    return %c0_i32, %c0_i32_0 : i32, i32
  }
  func.func @transform_2(%arg0: i32) -> (i32, i32) {
    %c0_i32 = arith.constant 0 : i32
    %c0_i32_0 = arith.constant 0 : i32
    %c0_i32_1 = arith.constant 0 : i32
    return %c0_i32, %c0_i32_0 : i32, i32
  }
  func.func @transform_3(%arg0: i32) -> (i32, i32) {
    %c0_i32 = arith.constant 0 : i32
    %c0_i32_0 = arith.constant 0 : i32
    %c0_i32_1 = arith.constant 0 : i32
    return %c0_i32, %c0_i32_0 : i32, i32
  }
  func.func @transform_4(%arg0: i32) -> (i32, i32) {
    %c0_i32 = arith.constant 0 : i32
    %c0_i32_0 = arith.constant 0 : i32
    %c0_i32_1 = arith.constant 0 : i32
    return %c0_i32, %c0_i32_0 : i32, i32
  }
  func.func @transform_5(%arg0: i32) -> (i32, i32) {
    %c0_i32 = arith.constant 0 : i32
    %c0_i32_0 = arith.constant 0 : i32
    return %arg0, %c0_i32 : i32, i32
  }
}

</mosaic_0001>

<llo_original>
// kernel: prenorm_linear.1
$region0: #{prenorm_linear.1}
  #allocation0 [shape = 'u32[]', space=smem, size = 0x4, offset = 0x4, fixed_abs, tag = 'smem constant byte address 0x4 - core index']
  #allocation1 [shape = 'u32[72,128]{1,0:T(1,128)}', space=vmem, size = 0x9000, scoped, tag = 'internal scratch']
  %s0 = inlined_call_operand.vmem [shape: f32[16,128], index: 0, kind: input, shape index: {}]
  %s1 = inlined_call_operand.vmem [shape: f32[1,128], index: 1, kind: input, shape index: {}]
  %s2 = inlined_call_operand.vmem [shape: f32[1,128], index: 2, kind: input, shape index: {}]
  %s3 = inlined_call_operand.vmem [shape: f32[128,128], index: 3, kind: input, shape index: {}]
  %s4 = inlined_call_operand.vmem [shape: f32[1,128], index: 4, kind: input, shape index: {}]
  %s5 = inlined_call_operand.vmem [shape: f32[16,128], index: 5, kind: output, shape index: {}]
  %s6 = sld [smem:[#allocation0]]
  $region30: #{prenorm_linear.1} parent=0
    _
  %s8 = ssub.s32 1, %s6
  %s9 = scalar_select 0, %s8, %s6
  // Predicated region
  $region2: #{prenorm_linear.1} parent=0 // pred_check
    _
  $region3: #{prenorm_linear.1} parent=0 // pred_check_branch
    %11 = sbr.rel (0) target = $region5
  $region4: #{prenorm_linear.1} parent=0 // pred_region
    _
  $region5: #{prenorm_linear.1} parent=0 // pred_fallthru
    _
  // Predicated region
  $region6: #{prenorm_linear.1} parent=0 // pred_check
    _
  $region7: #{prenorm_linear.1} parent=0 // pred_check_branch
    %13 = sbr.rel (0) target = $region9
  $region8: #{prenorm_linear.1} parent=0 // pred_region
    _
  $region9: #{prenorm_linear.1} parent=0 // pred_fallthru
    _
  // Predicated region
  $region10: #{prenorm_linear.1} parent=0 // pred_check
    _
  $region11: #{prenorm_linear.1} parent=0 // pred_check_branch
    %15 = sbr.rel (0) target = $region13
  $region12: #{prenorm_linear.1} parent=0 // pred_region
    _
  $region13: #{prenorm_linear.1} parent=0 // pred_fallthru
    _
  // Predicated region
  $region14: #{prenorm_linear.1} parent=0 // pred_check
    _
  $region15: #{prenorm_linear.1} parent=0 // pred_check_branch
    %17 = sbr.rel (0) target = $region17
  $region16: #{prenorm_linear.1} parent=0 // pred_region
    _
  $region17: #{prenorm_linear.1} parent=0 // pred_fallthru
    _
  // Predicated region
  $region18: #{prenorm_linear.1} parent=0 // pred_check
    _
  $region19: #{prenorm_linear.1} parent=0 // pred_check_branch
    %19 = sbr.rel (0) target = $region21
  $region20: #{prenorm_linear.1} parent=0 // pred_region
    _
  $region21: #{prenorm_linear.1} parent=0 // pred_fallthru
    _
  %v20 = vld [vmem:[%s0] sm:$0xff]
  %v21 = vld [vmem:[%s0 + $0x8] sm:$0xff]
  %v22 = vld [vmem:[%s1] sm:$0x1]
  %v23 = vld [vmem:[%s2] sm:$0x1]
  %24 = vadd.xlane.f32.xlu0 %v20
  %v25 = vpop.xlane.xlu0 %24
  %26 = vadd.xlane.f32.xlu0 %v21
  %v27 = vpop.xlane.xlu0 %26
  %v28 = vmul.f32 %v20, %v20
  %v29 = vmul.f32 %v21, %v21
  %30 = vadd.xlane.f32.xlu0 %v28
  %v31 = vpop.xlane.xlu0 %30
  %32 = vadd.xlane.f32.xlu0 %v29
  %v33 = vpop.xlane.xlu0 %32
  %v34 = vmul.f32 %v25, 0.03125
  %v35 = vmul.f32 %v27, 0.03125
  %v36 = vmul.f32 %v31, 0.03125
  %v37 = vmul.f32 %v33, 0.03125
  %v38 = vmul.f32 %v34, %v34
  %v39 = vmul.f32 %v35, %v35
  %v40 = vsub.f32 %v36, %v38
  %v41 = vsub.f32 %v37, %v39
  %v42 = vmax.f32 %v40, 0.0
  %v43 = vmax.f32 %v41, 0.0
  %v44 = vadd.f32 %v42, 1e-05
  %v45 = vadd.f32 %v43, 1e-05
  %v46 = vrsqrt.pop %v44
  %v47 = vmul.f32 %v46, %v44
  %v48 = vmul.f32 %v47, %v46
  %v49 = vmul.f32 0.5, %v48
  %v50 = vsub.f32 1.5, %v49
  %v51 = vmul.f32 %v46, %v50
  %vm52 = vweird.f32 %v44
  %vm53 = vweird.f32 %v46
  %vm54 = vmor %vm52, %vm53
  %v55 = vsel %vm54, %v46, %v51
  %v56 = vrsqrt.pop %v45
  %v57 = vmul.f32 %v56, %v45
  %v58 = vmul.f32 %v57, %v56
  %v59 = vmul.f32 0.5, %v58
  %v60 = vsub.f32 1.5, %v59
  %v61 = vmul.f32 %v56, %v60
  %vm62 = vweird.f32 %v45
  %vm63 = vweird.f32 %v56
  %vm64 = vmor %vm62, %vm63
  %v65 = vsel %vm64, %v56, %v61
  %v66 = vsub.f32 %v20, %v34
  %v67 = vsub.f32 %v21, %v35
  %v68 = vmul.f32 %v66, %v55
  %v69 = vmul.f32 %v67, %v65
  %v71 = vperm.slane %v22, 0
  %v73 = vmul.f32 %v68, %v71
  %v74 = vmul.f32 %v69, %v71
  %v76 = vperm.slane %v23, 0
  %v78 = vadd.f32 %v73, %v76
  %v79 = vadd.f32 %v74, %v76
  %v80 = vld [vmem:[%s3] sm:$0xff]
  %v81 = vld [vmem:[%s3 + $0x8] sm:$0xff]
  %v82 = vld [vmem:[%s3 + $0x10] sm:$0xff]
  %v83 = vld [vmem:[%s3 + $0x18] sm:$0xff]
  %v84 = vld [vmem:[%s3 + $0x20] sm:$0xff]
  %v85 = vld [vmem:[%s3 + $0x28] sm:$0xff]
  %v86 = vld [vmem:[%s3 + $0x30] sm:$0xff]
  %v87 = vld [vmem:[%s3 + $0x38] sm:$0xff]
  %v88 = vld [vmem:[%s3 + $0x40] sm:$0xff]
  %v89 = vld [vmem:[%s3 + $0x48] sm:$0xff]
  %v90 = vld [vmem:[%s3 + $0x50] sm:$0xff]
  %v91 = vld [vmem:[%s3 + $0x58] sm:$0xff]
  %v92 = vld [vmem:[%s3 + $0x60] sm:$0xff]
  %v93 = vld [vmem:[%s3 + $0x68] sm:$0xff]
  %v94 = vld [vmem:[%s3 + $0x70] sm:$0xff]
  %v95 = vld [vmem:[%s3 + $0x78] sm:$0xff]
  %v96 = vld [vmem:[%s4] sm:$0x1]
  %v98 = vperm.slane %v96, 0
  %100 = vmatpush.msra.mxu0 %v95
  %101 = vmatpush.msra.mxu0 %v94
  %102 = vmatpush.msra.mxu0 %v93
  %103 = vmatpush.msra.mxu0 %v92
  %104 = vmatpush.msra.mxu0 %v91
  %105 = vmatpush.msra.mxu0 %v90
  %106 = vmatpush.msra.mxu0 %v89
  %107 = vmatpush.msra.mxu0 %v88
  %108 = vmatpush.msra.mxu0 %v87
  %109 = vmatpush.msra.mxu0 %v86
  %110 = vmatpush.msra.mxu0 %v85
  %111 = vmatpush.msra.mxu0 %v84
  %112 = vmatpush.msra.mxu0 %v83
  %113 = vmatpush.msra.mxu0 %v82
  %114 = vmatpush.msra.mxu0 %v81
  %115 = vmatpush.msra.mxu0 %v80
  %116 = vmatmul.f32.gmra.mxu0 %v78
  %v117 = vpop.f32.mrf.mxu0
  %v118 = vadd.f32 %v98, %v117
  %119 = vmatmul.f32.gmra.mxu0 %v79
  %v120 = vpop.f32.mrf.mxu0
  %v121 = vadd.f32 %v98, %v120
  %122 = vdwg.mxu0
  %123 = vst [vmem:[%s5] sm:$0xff] %v118
  %124 = vst [vmem:[%s5 + $0x8] sm:$0xff] %v121
  // Predicated region
  $region22: #{prenorm_linear.1} parent=0 // pred_check
    _
  $region23: #{prenorm_linear.1} parent=0 // pred_check_branch
    %126 = sbr.rel (0) target = $region25
  $region24: #{prenorm_linear.1} parent=0 // pred_region
    _
  $region25: #{prenorm_linear.1} parent=0 // pred_fallthru
    _
  // Predicated region
  $region26: #{prenorm_linear.1} parent=0 // pred_check
    _
  $region27: #{prenorm_linear.1} parent=0 // pred_check_branch
    %128 = sbr.rel (0) target = $region29
  $region28: #{prenorm_linear.1} parent=0 // pred_region
    _
  $region29: #{prenorm_linear.1} parent=0 // pred_fallthru
    _

</llo_original>
